<compile_context>
chip_gen: v7x
topology: tpu7x:2x2x1
jax: 0.10.0
libtpu: 0.0.40
codegen_flags: <defaults>
</compile_context>

<pallas_src>
import enum
from typing import List, NamedTuple, Optional

import numpy as np
import jax
import jax.numpy as jnp
from jax import lax
from jax.experimental import pallas as pl
from jax.experimental.pallas import tpu as pltpu


class PoolingMode(enum.IntEnum):
    SUM = 0
    MEAN = 1


class EmbeddingSpec(NamedTuple):
    num_embeddings: int
    embedding_dim: int
    pooling_mode: str
    dtype: jnp.dtype
    weight: Optional[jnp.ndarray]
    sparse: bool
    include_last_offset: bool


class AdaGradArgs(NamedTuple):
    hessian: List[jnp.ndarray]
    bf16_trail: List[Optional[jnp.ndarray]]
    eps: float
    lr: float


def _round_up(x: int, m: int) -> int:
    return ((x + m - 1) // m) * m


# ----------------------------------------------------------------------------
# Pallas kernel
# ----------------------------------------------------------------------------
def _merged_embeddingbag_kernel(idx_ref, row_ref, invc_ref, w_ref,
                                out_ref, acc_ref):
    # idx_ref : VMEM int32 (N, 1)   global (concatenated-table) row index, -1 pad
    # row_ref : VMEM int32 (1, N)   output row id = table*B + bag, -1 pad
    # invc_ref: VMEM f32   (Mt, 1)  1.0 (SUM) or 1/count / 0.0-if-empty (MEAN)
    # w_ref   : VMEM       (Vt, D)  weight tile of the merged table
    # out_ref : VMEM       (Mt, D)
    # acc_ref : VMEM f32   (Mt, D)  accumulator across the V (reduction) axis
    m = pl.program_id(0)
    v = pl.program_id(1)
    block_m, _ = acc_ref.shape
    block_v = w_ref.shape[0]
    n_pad = idx_ref.shape[0]

    @pl.when(v == 0)
    def _init():
        acc_ref[...] = jnp.zeros_like(acc_ref)

    # Gather selector: sel[j, c] = (global_idx[j] == v*block_v + c)
    local = idx_ref[...] - v * block_v                                  # (N, 1)
    col = lax.broadcasted_iota(jnp.int32, (n_pad, block_v), 1)          # (N, Vt)
    sel = (local == col).astype(w_ref.dtype)                            # (N, Vt)
    # Gathered rows for this weight tile (MXU): (N, Vt) @ (Vt, D) -> (N, D) f32
    gathered = jnp.dot(sel, w_ref[...], preferred_element_type=jnp.float32)

    # Pooling selector: pool[r, j] = (row_id[j] == m*block_m + r)
    rows = lax.broadcasted_iota(jnp.int32, (block_m, n_pad), 0) + m * block_m
    pool = (rows == row_ref[...]).astype(jnp.float32)                   # (Mt, N)
    # Pooled accumulation (MXU): (Mt, N) @ (N, D) -> (Mt, D)
    acc_ref[...] += jnp.dot(pool, gathered, preferred_element_type=jnp.float32)

    @pl.when(v == pl.num_programs(1) - 1)
    def _finalize():
        out_ref[...] = (acc_ref[...] * invc_ref[...]).astype(out_ref.dtype)


def _merged_forward_pallas(w_cat, idx2d, row2d, invc, block_m, block_v,
                           out_dtype):
    m_pad = invc.shape[0]
    v_pad, d = w_cat.shape
    n_pad = idx2d.shape[0]
    grid = (m_pad // block_m, v_pad // block_v)
    return pl.pallas_call(
        _merged_embeddingbag_kernel,
        out_shape=jax.ShapeDtypeStruct((m_pad, d), out_dtype),
        grid_spec=pltpu.PrefetchScalarGridSpec(
            num_scalar_prefetch=0,
            grid=grid,
            in_specs=[
                pl.BlockSpec((n_pad, 1), lambda m, v: (0, 0)),      # idx
                pl.BlockSpec((1, n_pad), lambda m, v: (0, 0)),      # row id
                pl.BlockSpec((block_m, 1), lambda m, v: (m, 0)),    # 1/count
                pl.BlockSpec((block_v, d), lambda m, v: (v, 0)),    # weights
            ],
            out_specs=pl.BlockSpec((block_m, d), lambda m, v: (m, 0)),
            scratch_shapes=[pltpu.VMEM((block_m, d), jnp.float32)],
        ),
        compiler_params=pltpu.CompilerParams(
            dimension_semantics=("parallel", "arbitrary")),
    )(idx2d, row2d, invc, w_cat)


# ----------------------------------------------------------------------------
# Glue: flatten the per-table ragged inputs into the packed kernel inputs.
# (Tiny integer work, not the hot path.)
# ----------------------------------------------------------------------------
def _build_metadata(indices_list, offsets_list, table_row_offsets,
                    pooling_mode, include_last_offset):
    n_tables = len(indices_list)
    batch_sizes = [int(o.shape[0]) - (1 if include_last_offset else 0)
                   for o in offsets_list]
    B = batch_sizes[0]
    assert all(b == B for b in batch_sizes), "all tables must share batch size"

    idx_parts, row_parts, inv_parts = [], [], []
    for t in range(n_tables):
        idx = indices_list[t].astype(jnp.int32)
        off = offsets_list[t].astype(jnp.int32)
        n_idx = int(idx.shape[0])
        if include_last_offset:
            starts, ends = off[:-1], off[1:]
        else:
            starts = off
            ends = jnp.concatenate([off[1:], jnp.array([n_idx], jnp.int32)])
        pos = jnp.arange(n_idx, dtype=jnp.int32)
        # NOTE: assumes offsets are sorted and start at 0 (EmbeddingBag contract)
        bag = (jnp.searchsorted(starts, pos, side="right") - 1).astype(jnp.int32)
        idx_parts.append(idx + jnp.int32(int(table_row_offsets[t])))
        row_parts.append(bag + jnp.int32(t * B))
        counts = (ends - starts).astype(jnp.float32)
        if pooling_mode == PoolingMode.MEAN:
            # empty MEAN bags -> 0 (matches current PyTorch EmbeddingBag)
            inv = jnp.where(counts > 0, 1.0 / jnp.maximum(counts, 1.0), 0.0)
        else:
            inv = jnp.ones_like(counts)
        inv_parts.append(inv)

    idx_all = jnp.concatenate(idx_parts)
    row_all = jnp.concatenate(row_parts)
    inv_all = jnp.concatenate(inv_parts)
    n_total = int(idx_all.shape[0])
    n_pad = max(128, _round_up(n_total, 128))

    # padded positions: -1 matches no column / no row -> contribute nothing
    idx2d = jnp.full((n_pad, 1), -1, jnp.int32).at[:n_total, 0].set(idx_all)
    row2d = jnp.full((1, n_pad), -1, jnp.int32).at[0, :n_total].set(row_all)

    M = n_tables * B
    block_m = min(256, _round_up(M, 8))
    m_pad = _round_up(M, block_m)
    invc = jnp.zeros((m_pad, 1), jnp.float32).at[:M, 0].set(inv_all)
    return idx2d, row2d, invc, B, block_m


def merged_embeddingbag_forward(w_cat, indices_list, offsets_list,
                                table_row_offsets, n_tables, pooling_mode,
                                include_last_offset, block_v, out_dtype):
    idx2d, row2d, invc, B, block_m = _build_metadata(
        indices_list, offsets_list, table_row_offsets, pooling_mode,
        include_last_offset)
    merged_out = _merged_forward_pallas(
        w_cat, idx2d, row2d, invc, block_m, block_v, out_dtype)
    return [merged_out[t * B:(t + 1) * B] for t in range(n_tables)]


# ----------------------------------------------------------------------------
# Forward-only JAX port of MergedEmbeddingBagWithAdaGrad
# ----------------------------------------------------------------------------
class MergedEmbeddingBagWithAdaGrad:
    def __init__(self, embedding_specs: List[EmbeddingSpec],
                 lr: float = 0.01, eps: float = 1e-10):
        assert len(embedding_specs) > 0
        self.n_tables = len(embedding_specs)
        self.embedding_dim = embedding_specs[0].embedding_dim
        assert all(s.embedding_dim == self.embedding_dim for s in embedding_specs)
        self.dtype = embedding_specs[0].dtype
        assert all(s.dtype == self.dtype for s in embedding_specs)
        mode = embedding_specs[0].pooling_mode
        assert mode in ("sum", "mean")
        assert all(s.pooling_mode == mode for s in embedding_specs)
        self.pooling_mode = PoolingMode.SUM if mode == "sum" else PoolingMode.MEAN
        self.include_last_offset = embedding_specs[0].include_last_offset
        assert all(s.include_last_offset == self.include_last_offset
                   for s in embedding_specs)

        self.weights = []
        for spec in embedding_specs:
            w = spec.weight
            if w is None:
                w = jnp.zeros((spec.num_embeddings, spec.embedding_dim),
                              dtype=spec.dtype)
            self.weights.append(w.astype(self.dtype))

        # Merge all tables into one row-concatenated, tile-padded weight
        # (done once at construction, not per forward).
        v_sizes = [int(s.num_embeddings) for s in embedding_specs]
        self.table_row_offsets = np.cumsum([0] + v_sizes)[:-1]
        v_total = int(sum(v_sizes))
        self.block_v = min(512, _round_up(v_total, 128))
        v_pad = _round_up(v_total, self.block_v)
        w_cat = jnp.zeros((v_pad, self.embedding_dim), dtype=self.dtype)
        r = 0
        for w in self.weights:
            w_cat = w_cat.at[r:r + w.shape[0]].set(w)
            r += w.shape[0]
        self.w_cat = w_cat

        # AdaGrad optimizer state (forward-unused; kept for module parity).
        hessian, trail = [], []
        for w in self.weights:
            if w.dtype == jnp.bfloat16:
                trail.append(jnp.zeros_like(w, dtype=jnp.bfloat16))
                hessian.append(jnp.zeros(w.shape, dtype=jnp.float32))
            else:
                trail.append(jnp.zeros((0,), dtype=jnp.bfloat16))
                hessian.append(jnp.zeros_like(w))
        self.adagrad_args = AdaGradArgs(hessian=hessian, bf16_trail=trail,
                                        eps=eps, lr=lr)

    def forward(self, indices, offsets):
        return merged_embeddingbag_forward(
            self.w_cat, indices, offsets, self.table_row_offsets,
            self.n_tables, self.pooling_mode, self.include_last_offset,
            self.block_v, self.dtype)

    __call__ = forward


# ----------------------------------------------------------------------------
# Pure-JAX reference for verification
# ----------------------------------------------------------------------------
def _ref_one_table(weight, indices, offsets, pooling_mode, include_last_offset):
    n_idx = int(indices.shape[0])
    if include_last_offset:
        B = int(offsets.shape[0]) - 1
        starts, ends = offsets[:-1], offsets[1:]
    else:
        B = int(offsets.shape[0])
        starts = offsets
        ends = jnp.concatenate([offsets[1:], jnp.array([n_idx], offsets.dtype)])
    rows = weight[indices].astype(jnp.float32)
    pos = jnp.arange(n_idx)
    bag_id = jnp.searchsorted(starts, pos, side="right") - 1
    out = jax.ops.segment_sum(rows, bag_id, num_segments=B)
    if pooling_mode == PoolingMode.MEAN:
        cnt = (ends - starts).astype(jnp.float32)
        out = jnp.where(cnt[:, None] > 0, out / jnp.maximum(cnt, 1.0)[:, None], 0.0)
    return out.astype(weight.dtype)


if __name__ == "__main__":
    key = jax.random.PRNGKey(0)
    D = 128          # embedding_dim (lane-aligned)
    B = 4            # bags per table
    vocab_sizes = [50, 40, 24]

    indices = [
        jnp.array([3, 7, 1, 0, 9, 2, 4, 8, 5], dtype=jnp.int32),
        jnp.array([0, 1, 2, 3, 4, 5, 6], dtype=jnp.int32),
        jnp.array([10, 11, 3, 3, 0, 22, 7, 9, 1, 2], dtype=jnp.int32),
    ]

    weights = []
    for V in vocab_sizes:
        key, sub = jax.random.split(key)
        weights.append(jax.random.normal(sub, (V, D), dtype=jnp.float32) * 0.1)

    # --- config 1: mean pooling, include_last_offset=False (empty bag in t1) ---
    offsets_a = [
        jnp.array([0, 3, 5, 7], dtype=jnp.int32),      # bags 3,2,2,2
        jnp.array([0, 2, 2, 5], dtype=jnp.int32),      # bag 1 empty
        jnp.array([0, 1, 4, 8], dtype=jnp.int32),      # bags 1,3,4,2
    ]
    specs_a = [EmbeddingSpec(V, D, "mean", jnp.float32, w, False, False)
               for V, w in zip(vocab_sizes, weights)]
    mod_a = MergedEmbeddingBagWithAdaGrad(specs_a, lr=0.01, eps=1e-10)
    outs_a = [jax.block_until_ready(o) for o in mod_a(indices, offsets_a)]
    for t in range(len(weights)):
        ref = _ref_one_table(weights[t], indices[t], offsets_a[t],
                             PoolingMode.MEAN, False)
        assert outs_a[t].shape == (B, D), outs_a[t].shape
        np.testing.assert_allclose(np.asarray(outs_a[t]), np.asarray(ref),
                                   rtol=1e-5, atol=1e-5)

    # --- config 2: sum pooling, include_last_offset=True ---
    offsets_b = [
        jnp.array([0, 3, 5, 7, 9], dtype=jnp.int32),
        jnp.array([0, 2, 2, 5, 7], dtype=jnp.int32),
        jnp.array([0, 1, 4, 8, 10], dtype=jnp.int32),
    ]
    specs_b = [EmbeddingSpec(V, D, "sum", jnp.float32, w, False, True)
               for V, w in zip(vocab_sizes, weights)]
    mod_b = MergedEmbeddingBagWithAdaGrad(specs_b, lr=0.01, eps=1e-10)
    outs_b = [jax.block_until_ready(o) for o in mod_b(indices, offsets_b)]
    for t in range(len(weights)):
        ref = _ref_one_table(weights[t], indices[t], offsets_b[t],
                             PoolingMode.SUM, True)
        assert outs_b[t].shape == (B, D), outs_b[t].shape
        np.testing.assert_allclose(np.asarray(outs_b[t]), np.asarray(ref),
                                   rtol=1e-5, atol=1e-5)

    print("KERNEL_OK")
</pallas_src>

<mosaic_0001>
module attributes {stable_mosaic.version = 11 : i64} {
  func.func @_merged_embeddingbag_kernel(%arg0: i32, %arg1: i32, %arg2: memref<128x1xi32, #tpu.memory_space<vmem>>, %arg3: memref<1x128xi32, #tpu.memory_space<vmem>>, %arg4: memref<16x1xf32, #tpu.memory_space<vmem>>, %arg5: memref<128x128xf32, #tpu.memory_space<vmem>>, %arg6: memref<16x128xf32, #tpu.memory_space<vmem>>, %arg7: memref<16x128xf32, #tpu.memory_space<vmem>>) attributes {dimension_semantics = [#tpu.dimension_semantics<parallel>, #tpu.dimension_semantics<arbitrary>], iteration_bounds = array<i64: 1, 1>, scalar_prefetch = 0 : i64, scratch_operands = 1 : i64, tpu.core_type = #tpu.core_type<tc>, window_params = [{pipeline_mode = #tpu.pipeline_mode<synchronous>, transform_indices = @transform_0, window_bounds = array<i64: 128, 1>}, {pipeline_mode = #tpu.pipeline_mode<synchronous>, transform_indices = @transform_1, window_bounds = array<i64: 1, 128>}, {transform_indices = @transform_2, window_bounds = array<i64: 16, 1>}, {transform_indices = @transform_3, window_bounds = array<i64: 128, 128>}, {transform_indices = @transform_4, window_bounds = array<i64: 16, 128>}]} {
    %c0_i32 = arith.constant 0 : i32
    %0 = arith.cmpi eq, %arg1, %c0_i32 : i32
    %1 = arith.extui %0 : i1 to i32
    %c0_i32_0 = arith.constant 0 : i32
    %2 = arith.cmpi ne, %1, %c0_i32_0 : i32
    scf.if %2 {
      %cst_13 = arith.constant 0.000000e+00 : f32
      %30 = vector.broadcast %cst_13 : f32 to vector<16x128xf32>
      %c0_14 = arith.constant 0 : index
      %c0_15 = arith.constant 0 : index
      %31 = vector.load %arg7[%c0_14, %c0_15] : memref<16x128xf32, #tpu.memory_space<vmem>>, vector<16x128xf32>
      tpu.vector_store %arg7[%c0_14, %c0_15], %30 {strides = array<i32>} : memref<16x128xf32, #tpu.memory_space<vmem>>, vector<16x128xf32>,
    } else {
    }
    %c0 = arith.constant 0 : index
    %c0_1 = arith.constant 0 : index
    %3 = vector.load %arg2[%c0, %c0_1] : memref<128x1xi32, #tpu.memory_space<vmem>>, vector<128x1xi32>
    %c128_i32 = arith.constant 128 : i32
    %4 = arith.muli %arg1, %c128_i32 : i32
    %5 = vector.broadcast %4 : i32 to vector<128x1xi32>
    %6 = arith.subi %3, %5 : vector<128x1xi32>
    %7 = tpu.iota {dimensions = array<i32: 1>} : vector<128x128xi32>
    %8 = vector.broadcast %6 : vector<128x1xi32> to vector<128x128xi32>
    %9 = arith.cmpi eq, %8, %7 : vector<128x128xi32>
    %10 = arith.extui %9 : vector<128x128xi1> to vector<128x128xi32>
    %11 = arith.sitofp %10 : vector<128x128xi32> to vector<128x128xf32>
    %c0_2 = arith.constant 0 : index
    %c0_3 = arith.constant 0 : index
    %12 = vector.load %arg5[%c0_2, %c0_3] : memref<128x128xf32, #tpu.memory_space<vmem>>, vector<128x128xf32>
    %cst = arith.constant dense<0.000000e+00> : vector<128x128xf32>
    %13 = tpu.matmul %11, %12, %cst {dimension_numbers = #tpu.dot_dimension_numbers<[1], [0], [0], [1], [0, 0, 1, 1], [], []>} : vector<128x128xf32>, vector<128x128xf32>, vector<128x128xf32> -> vector<128x128xf32>
    %14 = tpu.iota {dimensions = array<i32: 0>} : vector<16x128xi32>
    %c16_i32 = arith.constant 16 : i32
    %15 = arith.muli %arg0, %c16_i32 : i32
    %16 = vector.broadcast %15 : i32 to vector<16x128xi32>
    %17 = arith.addi %14, %16 : vector<16x128xi32>
    %c0_4 = arith.constant 0 : index
    %c0_5 = arith.constant 0 : index
    %18 = vector.load %arg3[%c0_4, %c0_5] : memref<1x128xi32, #tpu.memory_space<vmem>>, vector<1x128xi32>
    %19 = vector.broadcast %18 : vector<1x128xi32> to vector<16x128xi32>
    %20 = arith.cmpi eq, %17, %19 : vector<16x128xi32>
    %21 = arith.extui %20 : vector<16x128xi1> to vector<16x128xi32>
    %22 = arith.sitofp %21 : vector<16x128xi32> to vector<16x128xf32>
    %c0_6 = arith.constant 0 : index
    %c0_7 = arith.constant 0 : index
    %23 = vector.load %arg7[%c0_6, %c0_7] : memref<16x128xf32, #tpu.memory_space<vmem>>, vector<16x128xf32>
    %cst_8 = arith.constant dense<0.000000e+00> : vector<16x128xf32>
    %24 = tpu.matmul %22, %13, %cst_8 {dimension_numbers = #tpu.dot_dimension_numbers<[1], [0], [0], [1], [0, 0, 1, 1], [], []>} : vector<16x128xf32>, vector<128x128xf32>, vector<16x128xf32> -> vector<16x128xf32>
    %25 = arith.addf %23, %24 : vector<16x128xf32>
    %c0_9 = arith.constant 0 : index
    %c0_10 = arith.constant 0 : index
    %26 = vector.load %arg7[%c0_9, %c0_10] : memref<16x128xf32, #tpu.memory_space<vmem>>, vector<16x128xf32>
    tpu.vector_store %arg7[%c0_9, %c0_10], %25 {strides = array<i32>} : memref<16x128xf32, #tpu.memory_space<vmem>>, vector<16x128xf32>,
    %c0_i32_11 = arith.constant 0 : i32
    %27 = arith.cmpi eq, %arg1, %c0_i32_11 : i32
    %28 = arith.extui %27 : i1 to i32
    %c0_i32_12 = arith.constant 0 : i32
    %29 = arith.cmpi ne, %28, %c0_i32_12 : i32
    scf.if %29 {
      %c0_13 = arith.constant 0 : index
      %c0_14 = arith.constant 0 : index
      %30 = vector.load %arg7[%c0_13, %c0_14] : memref<16x128xf32, #tpu.memory_space<vmem>>, vector<16x128xf32>
      %c0_15 = arith.constant 0 : index
      %c0_16 = arith.constant 0 : index
      %31 = vector.load %arg4[%c0_15, %c0_16] : memref<16x1xf32, #tpu.memory_space<vmem>>, vector<16x1xf32>
      %32 = vector.broadcast %31 : vector<16x1xf32> to vector<16x128xf32>
      %33 = arith.mulf %30, %32 : vector<16x128xf32>
      %c0_17 = arith.constant 0 : index
      %c0_18 = arith.constant 0 : index
      %34 = vector.load %arg6[%c0_17, %c0_18] : memref<16x128xf32, #tpu.memory_space<vmem>>, vector<16x128xf32>
      tpu.vector_store %arg6[%c0_17, %c0_18], %33 {strides = array<i32>} : memref<16x128xf32, #tpu.memory_space<vmem>>, vector<16x128xf32>,
    } else {
    }
    return
  }
  func.func @transform_0(%arg0: i32, %arg1: i32) -> (i32, i32) {
    %c0_i32 = arith.constant 0 : i32
    %c0_i32_0 = arith.constant 0 : i32
    %c0_i32_1 = arith.constant 0 : i32
    return %c0_i32, %c0_i32_0 : i32, i32
  }
  func.func @transform_1(%arg0: i32, %arg1: i32) -> (i32, i32) {
    %c0_i32 = arith.constant 0 : i32
    %c0_i32_0 = arith.constant 0 : i32
    %c0_i32_1 = arith.constant 0 : i32
    return %c0_i32, %c0_i32_0 : i32, i32
  }
  func.func @transform_2(%arg0: i32, %arg1: i32) -> (i32, i32) {
    %c0_i32 = arith.constant 0 : i32
    %c0_i32_0 = arith.constant 0 : i32
    return %arg0, %c0_i32 : i32, i32
  }
  func.func @transform_3(%arg0: i32, %arg1: i32) -> (i32, i32) {
    %c0_i32 = arith.constant 0 : i32
    %c0_i32_0 = arith.constant 0 : i32
    return %arg1, %c0_i32 : i32, i32
  }
  func.func @transform_4(%arg0: i32, %arg1: i32) -> (i32, i32) {
    %c0_i32 = arith.constant 0 : i32
    %c0_i32_0 = arith.constant 0 : i32
    return %arg0, %c0_i32 : i32, i32
  }
}

</mosaic_0001>

<llo_original>
// kernel: tpu_custom_call.1
$region0: #{tpu_custom_call.1}
  #allocation0 [shape = 'u32[]', space=smem, size = 0x4, offset = 0x4, fixed_abs, tag = 'smem constant byte address 0x4 - core index']
  #allocation1 [shape = 'u32[144,128]{1,0:T(1,128)}', space=vmem, size = 0x12000, scoped, tag = 'internal scratch']
  #allocation2 [shape = 'f32[16,128]{1,0:T(8,128)}', space=vmem, size = 0x2000, scoped, tag = 'scratch operand']
  %s0 = inlined_call_operand.vmem [shape: s32[128,1], index: 0, kind: input, shape index: {}]
  %s1 = inlined_call_operand.vmem [shape: s32[1,128], index: 1, kind: input, shape index: {}]
  %s2 = inlined_call_operand.vmem [shape: f32[16,1], index: 2, kind: input, shape index: {}]
  %s3 = inlined_call_operand.vmem [shape: f32[128,128], index: 3, kind: input, shape index: {}]
  %s4 = inlined_call_operand.hbm [shape: f32[16,128], index: 4, kind: output, shape index: {}]
  %s5 = sld [smem:[#allocation0]]
  $region34: #{tpu_custom_call.1} parent=0
    _
  %s7 = ssub.s32 1, %s5
  %s8 = scalar_select 0, %s7, %s5
  $region1: #{tpu_custom_call.1} parent=0
    #allocation3 [shape = 'u8[8192]{0}', space=vmem, size = 0x2000, scoped, tag = 'output window, operand 0, single buffered']
    #allocation4 [shape = 's32[1]{0}', space=sflag, size = 0x4, scoped, tag = 'scoped memory for tpu_custom_call.1']
    %9 = vsyncpa [#allocation4], 0
    // Predicated region
    $region2: #{tpu_custom_call.1} parent=1 // pred_check
      _
    $region3: #{tpu_custom_call.1} parent=1 // pred_check_branch
      %11 = sbr.rel (0) target = $region5
    $region4: #{tpu_custom_call.1} parent=1 // pred_region
      _
    $region5: #{tpu_custom_call.1} parent=1 // pred_fallthru
      _
    // Predicated region
    $region6: #{tpu_custom_call.1} parent=1 // pred_check
      _
    $region7: #{tpu_custom_call.1} parent=1 // pred_check_branch
      %13 = sbr.rel (0) target = $region9
    $region8: #{tpu_custom_call.1} parent=1 // pred_region
      _
    $region9: #{tpu_custom_call.1} parent=1 // pred_fallthru
      _
    // Predicated region
    $region10: #{tpu_custom_call.1} parent=1 // pred_check
      _
    $region11: #{tpu_custom_call.1} parent=1 // pred_check_branch
      %15 = sbr.rel (0) target = $region13
    $region12: #{tpu_custom_call.1} parent=1 // pred_region
      _
    $region13: #{tpu_custom_call.1} parent=1 // pred_fallthru
      _
    // Predicated region
    $region14: #{tpu_custom_call.1} parent=1 // pred_check
      _
    $region15: #{tpu_custom_call.1} parent=1 // pred_check_branch
      %17 = sbr.rel (0) target = $region17
    $region16: #{tpu_custom_call.1} parent=1 // pred_region
      _
    $region17: #{tpu_custom_call.1} parent=1 // pred_fallthru
      _
    %p18 = scmp.eq.s32.totalorder 0, 0
    // Predicated region
    $region18: #{tpu_custom_call.1} parent=1 // pred_check
      %p19 = pneg %p18
    $region19: #{tpu_custom_call.1} parent=1 // pred_check_branch
      %21 = sbr.rel (%p19) target = $region21
    $region20: #{tpu_custom_call.1} parent=1 // pred_region
      %22 = vst [vmem:[#allocation2] sm:$0xff] 0.0
      %23 = vst [vmem:[#allocation2 + $0x8] sm:$0xff] 0.0
    $region21: #{tpu_custom_call.1} parent=1 // pred_fallthru
      _
    %v24 = vld [vmem:[%s0] sm:$0xff]
    %v25 = vld [vmem:[%s0 + $0x8] sm:$0xff]
    %v26 = vld [vmem:[%s0 + $0x10] sm:$0xff]
    %v27 = vld [vmem:[%s0 + $0x18] sm:$0xff]
    %v28 = vld [vmem:[%s0 + $0x20] sm:$0xff]
    %v29 = vld [vmem:[%s0 + $0x28] sm:$0xff]
    %v30 = vld [vmem:[%s0 + $0x30] sm:$0xff]
    %v31 = vld [vmem:[%s0 + $0x38] sm:$0xff]
    %v32 = vld [vmem:[%s0 + $0x40] sm:$0xff]
    %v33 = vld [vmem:[%s0 + $0x48] sm:$0xff]
    %v34 = vld [vmem:[%s0 + $0x50] sm:$0xff]
    %v35 = vld [vmem:[%s0 + $0x58] sm:$0xff]
    %v36 = vld [vmem:[%s0 + $0x60] sm:$0xff]
    %v37 = vld [vmem:[%s0 + $0x68] sm:$0xff]
    %v38 = vld [vmem:[%s0 + $0x70] sm:$0xff]
    %v39 = vld [vmem:[%s0 + $0x78] sm:$0xff]
    %s40 = smul.u32 0, 128
    %v41 = vstv %s40
    %v42 = vsub.s32 %v24, %v41
    %v43 = vsub.s32 %v25, %v41
    %v44 = vsub.s32 %v26, %v41
    %v45 = vsub.s32 %v27, %v41
    %v46 = vsub.s32 %v28, %v41
    %v47 = vsub.s32 %v29, %v41
    %v48 = vsub.s32 %v30, %v41
    %v49 = vsub.s32 %v31, %v41
    %v50 = vsub.s32 %v32, %v41
    %v51 = vsub.s32 %v33, %v41
    %v52 = vsub.s32 %v34, %v41
    %v53 = vsub.s32 %v35, %v41
    %v54 = vsub.s32 %v36, %v41
    %v55 = vsub.s32 %v37, %v41
    %v56 = vsub.s32 %v38, %v41
    %v57 = vsub.s32 %v39, %v41
    %v58 = vlaneseq
    %v59 = vand.u32 %v58, 127
    %60 = vset.pattern.permute.xlu0 0
    %61 = vperm.xlu0 %60, %v42
    %v62 = vpop.permute.xlu0 %61
    %63 = vset.pattern.permute.xlu0 0
    %64 = vperm.xlu0 %63, %v43
    %v65 = vpop.permute.xlu0 %64
    %66 = vset.pattern.permute.xlu0 0
    %67 = vperm.xlu0 %66, %v44
    %v68 = vpop.permute.xlu0 %67
    %69 = vset.pattern.permute.xlu0 0
    %70 = vperm.xlu0 %69, %v45
    %v71 = vpop.permute.xlu0 %70
    %72 = vset.pattern.permute.xlu0 0
    %73 = vperm.xlu0 %72, %v46
    %v74 = vpop.permute.xlu0 %73
    %75 = vset.pattern.permute.xlu0 0
    %76 = vperm.xlu0 %75, %v47
    %v77 = vpop.permute.xlu0 %76
    %78 = vset.pattern.permute.xlu0 0
    %79 = vperm.xlu0 %78, %v48
    %v80 = vpop.permute.xlu0 %79
    %81 = vset.pattern.permute.xlu0 0
    %82 = vperm.xlu0 %81, %v49
    %v83 = vpop.permute.xlu0 %82
    %84 = vset.pattern.permute.xlu0 0
    %85 = vperm.xlu0 %84, %v50
    %v86 = vpop.permute.xlu0 %85
    %87 = vset.pattern.permute.xlu0 0
    %88 = vperm.xlu0 %87, %v51
    %v89 = vpop.permute.xlu0 %88
    %90 = vset.pattern.permute.xlu0 0
    %91 = vperm.xlu0 %90, %v52
    %v92 = vpop.permute.xlu0 %91
    %93 = vset.pattern.permute.xlu0 0
    %94 = vperm.xlu0 %93, %v53
    %v95 = vpop.permute.xlu0 %94
    %96 = vset.pattern.permute.xlu0 0
    %97 = vperm.xlu0 %96, %v54
    %v98 = vpop.permute.xlu0 %97
    %99 = vset.pattern.permute.xlu0 0
    %100 = vperm.xlu0 %99, %v55
    %v101 = vpop.permute.xlu0 %100
    %102 = vset.pattern.permute.xlu0 0
    %103 = vperm.xlu0 %102, %v56
    %v104 = vpop.permute.xlu0 %103
    %105 = vset.pattern.permute.xlu0 0
    %106 = vperm.xlu0 %105, %v57
    %v107 = vpop.permute.xlu0 %106
    %vm108 = vcmp.eq.s32.totalorder %v62, %v59
    %vm109 = vcmp.eq.s32.totalorder %v65, %v59
    %vm110 = vcmp.eq.s32.totalorder %v68, %v59
    %vm111 = vcmp.eq.s32.totalorder %v71, %v59
    %vm112 = vcmp.eq.s32.totalorder %v74, %v59
    %vm113 = vcmp.eq.s32.totalorder %v77, %v59
    %vm114 = vcmp.eq.s32.totalorder %v80, %v59
    %vm115 = vcmp.eq.s32.totalorder %v83, %v59
    %vm116 = vcmp.eq.s32.totalorder %v86, %v59
    %vm117 = vcmp.eq.s32.totalorder %v89, %v59
    %vm118 = vcmp.eq.s32.totalorder %v92, %v59
    %vm119 = vcmp.eq.s32.totalorder %v95, %v59
    %vm120 = vcmp.eq.s32.totalorder %v98, %v59
    %vm121 = vcmp.eq.s32.totalorder %v101, %v59
    %vm122 = vcmp.eq.s32.totalorder %v104, %v59
    %vm123 = vcmp.eq.s32.totalorder %v107, %v59
    %v124 = vsel %vm108, 1, 0
    %v125 = vsel %vm109, 1, 0
    %v126 = vsel %vm110, 1, 0
    %v127 = vsel %vm111, 1, 0
    %v128 = vsel %vm112, 1, 0
    %v129 = vsel %vm113, 1, 0
    %v130 = vsel %vm114, 1, 0
    %v131 = vsel %vm115, 1, 0
    %v132 = vsel %vm116, 1, 0
    %v133 = vsel %vm117, 1, 0
    %v134 = vsel %vm118, 1, 0
    %v135 = vsel %vm119, 1, 0
    %v136 = vsel %vm120, 1, 0
    %v137 = vsel %vm121, 1, 0
    %v138 = vsel %vm122, 1, 0
    %v139 = vsel %vm123, 1, 0
    %v140 = vcvt.s32.f32 %v124
    %v141 = vcvt.s32.f32 %v125
    %v142 = vcvt.s32.f32 %v126
    %v143 = vcvt.s32.f32 %v127
    %v144 = vcvt.s32.f32 %v128
    %v145 = vcvt.s32.f32 %v129
    %v146 = vcvt.s32.f32 %v130
    %v147 = vcvt.s32.f32 %v131
    %v148 = vcvt.s32.f32 %v132
    %v149 = vcvt.s32.f32 %v133
    %v150 = vcvt.s32.f32 %v134
    %v151 = vcvt.s32.f32 %v135
    %v152 = vcvt.s32.f32 %v136
    %v153 = vcvt.s32.f32 %v137
    %v154 = vcvt.s32.f32 %v138
    %v155 = vcvt.s32.f32 %v139
    %v156 = vld [vmem:[%s3] sm:$0xff]
    %v157 = vld [vmem:[%s3 + $0x8] sm:$0xff]
    %v158 = vld [vmem:[%s3 + $0x10] sm:$0xff]
    %v159 = vld [vmem:[%s3 + $0x18] sm:$0xff]
    %v160 = vld [vmem:[%s3 + $0x20] sm:$0xff]
    %v161 = vld [vmem:[%s3 + $0x28] sm:$0xff]
    %v162 = vld [vmem:[%s3 + $0x30] sm:$0xff]
    %v163 = vld [vmem:[%s3 + $0x38] sm:$0xff]
    %v164 = vld [vmem:[%s3 + $0x40] sm:$0xff]
    %v165 = vld [vmem:[%s3 + $0x48] sm:$0xff]
    %v166 = vld [vmem:[%s3 + $0x50] sm:$0xff]
    %v167 = vld [vmem:[%s3 + $0x58] sm:$0xff]
    %v168 = vld [vmem:[%s3 + $0x60] sm:$0xff]
    %v169 = vld [vmem:[%s3 + $0x68] sm:$0xff]
    %v170 = vld [vmem:[%s3 + $0x70] sm:$0xff]
    %v171 = vld [vmem:[%s3 + $0x78] sm:$0xff]
    %172 = vmatprep.subr.mxu0 0.0
    %173 = vmatpush1.msra.mxu0 %v156
    %174 = vmatprep.subr.mxu0 0.0
    %175 = vmatpush1.msra.mxu0 %v157
    %176 = vmatprep.subr.mxu0 0.0
    %177 = vmatpush1.msra.mxu0 %v158
    %178 = vmatprep.subr.mxu0 0.0
    %179 = vmatpush1.msra.mxu0 %v159
    %180 = vmatprep.subr.mxu0 0.0
    %181 = vmatpush1.msra.mxu0 %v160
    %182 = vmatprep.subr.mxu0 0.0
    %183 = vmatpush1.msra.mxu0 %v161
    %184 = vmatprep.subr.mxu0 0.0
    %185 = vmatpush1.msra.mxu0 %v162
    %186 = vmatprep.subr.mxu0 0.0
    %187 = vmatpush1.msra.mxu0 %v163
    %188 = vmatprep.subr.mxu0 0.0
    %189 = vmatpush1.msra.mxu0 %v164
    %190 = vmatprep.subr.mxu0 0.0
    %191 = vmatpush1.msra.mxu0 %v165
    %192 = vmatprep.subr.mxu0 0.0
    %193 = vmatpush1.msra.mxu0 %v166
    %194 = vmatprep.subr.mxu0 0.0
    %195 = vmatpush1.msra.mxu0 %v167
    %196 = vmatprep.subr.mxu0 0.0
    %197 = vmatpush1.msra.mxu0 %v168
    %198 = vmatprep.subr.mxu0 0.0
    %199 = vmatpush1.msra.mxu0 %v169
    %200 = vmatprep.subr.mxu0 0.0
    %201 = vmatpush1.msra.mxu0 %v170
    %202 = vmatprep.subr.mxu0 0.0
    %203 = vmatpush1.msra.mxu0 %v171
    %204 = vmatprep.subr.mxu0 0.0
    %205 = vmatpush1.msra.mxu0 0.0
    %206 = vmatprep.subr.mxu0 0.0
    %207 = vmatpush1.msra.mxu0 0.0
    %208 = vmatprep.subr.mxu0 0.0
    %209 = vmatpush1.msra.mxu0 0.0
    %210 = vmatprep.subr.mxu0 0.0
    %211 = vmatpush1.msra.mxu0 0.0
    %212 = vmatprep.subr.mxu0 0.0
    %213 = vmatpush1.msra.mxu0 0.0
    %214 = vmatprep.subr.mxu0 0.0
    %215 = vmatpush1.msra.mxu0 0.0
    %216 = vmatprep.subr.mxu0 0.0
    %217 = vmatpush1.msra.mxu0 0.0
    %218 = vmatprep.subr.mxu0 0.0
    %219 = vmatpush1.msra.mxu0 0.0
    %220 = vmatprep.subr.mxu0 0.0
    %221 = vmatpush1.msra.mxu0 0.0
    %222 = vmatprep.subr.mxu0 0.0
    %223 = vmatpush1.msra.mxu0 0.0
    %224 = vmatprep.subr.mxu0 0.0
    %225 = vmatpush1.msra.mxu0 0.0
    %226 = vmatprep.subr.mxu0 0.0
    %227 = vmatpush1.msra.mxu0 0.0
    %228 = vmatprep.subr.mxu0 0.0
    %229 = vmatpush1.msra.mxu0 0.0
    %230 = vmatprep.subr.mxu0 0.0
    %231 = vmatpush1.msra.mxu0 0.0
    %232 = vmatprep.subr.mxu0 0.0
    %233 = vmatpush1.msra.mxu0 0.0
    %234 = vmatprep.subr.mxu0 0.0
    %235 = vmatpush1.msra.mxu0 0.0
    %236 = vmatprep.mubr.f32.mxu0 0.0
    %237 = vmatmul.mubr.f32.gmra.mrb[0].mxu0 %v140
    %v238 = vpop.f32.mrb[0].mxu0
    %v239 = vadd.f32 0.0, %v238
    %v240 = vpop.f32.mrb[0].mxu0
    %241 = vmatprep.mubr.f32.mxu0 0.0
    %242 = vmatmul.mubr.f32.gmra.mrb[0].mxu0 %v141
    %v243 = vpop.f32.mrb[0].mxu0
    %v244 = vadd.f32 0.0, %v243
    %v245 = vpop.f32.mrb[0].mxu0
    %246 = vmatprep.mubr.f32.mxu0 0.0
    %247 = vmatmul.mubr.f32.gmra.mrb[0].mxu0 %v142
    %v248 = vpop.f32.mrb[0].mxu0
    %v249 = vadd.f32 0.0, %v248
    %v250 = vpop.f32.mrb[0].mxu0
    %251 = vmatprep.mubr.f32.mxu0 0.0
    %252 = vmatmul.mubr.f32.gmra.mrb[0].mxu0 %v143
    %v253 = vpop.f32.mrb[0].mxu0
    %v254 = vadd.f32 0.0, %v253
    %v255 = vpop.f32.mrb[0].mxu0
    %256 = vmatprep.mubr.f32.mxu0 0.0
    %257 = vmatmul.mubr.f32.gmra.mrb[0].mxu0 %v144
    %v258 = vpop.f32.mrb[0].mxu0
    %v259 = vadd.f32 0.0, %v258
    %v260 = vpop.f32.mrb[0].mxu0
    %261 = vmatprep.mubr.f32.mxu0 0.0
    %262 = vmatmul.mubr.f32.gmra.mrb[0].mxu0 %v145
    %v263 = vpop.f32.mrb[0].mxu0
    %v264 = vadd.f32 0.0, %v263
    %v265 = vpop.f32.mrb[0].mxu0
    %266 = vmatprep.mubr.f32.mxu0 0.0
    %267 = vmatmul.mubr.f32.gmra.mrb[0].mxu0 %v146
    %v268 = vpop.f32.mrb[0].mxu0
    %v269 = vadd.f32 0.0, %v268
    %v270 = vpop.f32.mrb[0].mxu0
    %271 = vmatprep.mubr.f32.mxu0 0.0
    %272 = vmatmul.mubr.f32.gmra.mrb[0].mxu0 %v147
    %v273 = vpop.f32.mrb[0].mxu0
    %v274 = vadd.f32 0.0, %v273
    %v275 = vpop.f32.mrb[0].mxu0
    %276 = vmatprep.mubr.f32.mxu0 0.0
    %277 = vmatmul.mubr.f32.gmra.mrb[0].mxu0 %v148
    %v278 = vpop.f32.mrb[0].mxu0
    %v279 = vadd.f32 0.0, %v278
    %v280 = vpop.f32.mrb[0].mxu0
    %281 = vmatprep.mubr.f32.mxu0 0.0
    %282 = vmatmul.mubr.f32.gmra.mrb[0].mxu0 %v149
    %v283 = vpop.f32.mrb[0].mxu0
    %v284 = vadd.f32 0.0, %v283
    %v285 = vpop.f32.mrb[0].mxu0
    %286 = vmatprep.mubr.f32.mxu0 0.0
    %287 = vmatmul.mubr.f32.gmra.mrb[0].mxu0 %v150
    %v288 = vpop.f32.mrb[0].mxu0
    %v289 = vadd.f32 0.0, %v288
    %v290 = vpop.f32.mrb[0].mxu0
    %291 = vmatprep.mubr.f32.mxu0 0.0
    %292 = vmatmul.mubr.f32.gmra.mrb[0].mxu0 %v151
    %v293 = vpop.f32.mrb[0].mxu0
    %v294 = vadd.f32 0.0, %v293
    %v295 = vpop.f32.mrb[0].mxu0
    %296 = vmatprep.mubr.f32.mxu0 0.0
    %297 = vmatmul.mubr.f32.gmra.mrb[0].mxu0 %v152
    %v298 = vpop.f32.mrb[0].mxu0
    %v299 = vadd.f32 0.0, %v298
    %v300 = vpop.f32.mrb[0].mxu0
    %301 = vmatprep.mubr.f32.mxu0 0.0
    %302 = vmatmul.mubr.f32.gmra.mrb[0].mxu0 %v153
    %v303 = vpop.f32.mrb[0].mxu0
    %v304 = vadd.f32 0.0, %v303
    %v305 = vpop.f32.mrb[0].mxu0
    %306 = vmatprep.mubr.f32.mxu0 0.0
    %307 = vmatmul.mubr.f32.gmra.mrb[0].mxu0 %v154
    %v308 = vpop.f32.mrb[0].mxu0
    %v309 = vadd.f32 0.0, %v308
    %v310 = vpop.f32.mrb[0].mxu0
    %311 = vmatprep.mubr.f32.mxu0 0.0
    %312 = vmatmul.mubr.f32.gmra.mrb[0].mxu0 %v155
    %v313 = vpop.f32.mrb[0].mxu0
    %v314 = vadd.f32 0.0, %v313
    %v315 = vpop.f32.mrb[0].mxu0
    %316 = vdwg.mxu0
    %v317 = vlaneseq
    %v318 = vshrl.u32 %v317, 7
    %v319 = vadd.s32 %v318, 8
    %s320 = smul.u32 0, 16
    %v321 = vstv %s320
    %v322 = vadd.s32 %v318, %v321
    %v323 = vadd.s32 %v319, %v321
    %v324 = vld [vmem:[%s1] sm:$0x1]
    %v325 = vlaneseq
    %v326 = vshrl.u32 %v325, 7
    %v327 = vsub.s32 0, %v326
    %v328 = vrot.slane %v324, %v327
    %vm329 = vcmp.eq.s32.totalorder %v322, %v328
    %vm330 = vcmp.eq.s32.totalorder %v323, %v328
    %v331 = vsel %vm329, 1, 0
    %v332 = vsel %vm330, 1, 0
    %v333 = vcvt.s32.f32 %v331
    %v334 = vcvt.s32.f32 %v332
    %v335 = vld [vmem:[#allocation2] sm:$0xff]
    %v336 = vld [vmem:[#allocation2 + $0x8] sm:$0xff]
    %337 = vmatprep.subr.mxu0 0.0
    %338 = vmatpush1.msra.mxu0 %v239
    %339 = vmatprep.subr.mxu0 0.0
    %340 = vmatpush1.msra.mxu0 %v244
    %341 = vmatprep.subr.mxu0 0.0
    %342 = vmatpush1.msra.mxu0 %v249
    %343 = vmatprep.subr.mxu0 0.0
    %344 = vmatpush1.msra.mxu0 %v254
    %345 = vmatprep.subr.mxu0 0.0
    %346 = vmatpush1.msra.mxu0 %v259
    %347 = vmatprep.subr.mxu0 0.0
    %348 = vmatpush1.msra.mxu0 %v264
    %349 = vmatprep.subr.mxu0 0.0
    %350 = vmatpush1.msra.mxu0 %v269
    %351 = vmatprep.subr.mxu0 0.0
    %352 = vmatpush1.msra.mxu0 %v274
    %353 = vmatprep.subr.mxu0 0.0
    %354 = vmatpush1.msra.mxu0 %v279
    %355 = vmatprep.subr.mxu0 0.0
    %356 = vmatpush1.msra.mxu0 %v284
    %357 = vmatprep.subr.mxu0 0.0
    %358 = vmatpush1.msra.mxu0 %v289
    %359 = vmatprep.subr.mxu0 0.0
    %360 = vmatpush1.msra.mxu0 %v294
    %361 = vmatprep.subr.mxu0 0.0
    %362 = vmatpush1.msra.mxu0 %v299
    %363 = vmatprep.subr.mxu0 0.0
    %364 = vmatpush1.msra.mxu0 %v304
    %365 = vmatprep.subr.mxu0 0.0
    %366 = vmatpush1.msra.mxu0 %v309
    %367 = vmatprep.subr.mxu0 0.0
    %368 = vmatpush1.msra.mxu0 %v314
    %369 = vmatprep.subr.mxu0 0.0
    %370 = vmatpush1.msra.mxu0 0.0
    %371 = vmatprep.subr.mxu0 0.0
    %372 = vmatpush1.msra.mxu0 0.0
    %373 = vmatprep.subr.mxu0 0.0
    %374 = vmatpush1.msra.mxu0 0.0
    %375 = vmatprep.subr.mxu0 0.0
    %376 = vmatpush1.msra.mxu0 0.0
    %377 = vmatprep.subr.mxu0 0.0
    %378 = vmatpush1.msra.mxu0 0.0
    %379 = vmatprep.subr.mxu0 0.0
    %380 = vmatpush1.msra.mxu0 0.0
    %381 = vmatprep.subr.mxu0 0.0
    %382 = vmatpush1.msra.mxu0 0.0
    %383 = vmatprep.subr.mxu0 0.0
    %384 = vmatpush1.msra.mxu0 0.0
    %385 = vmatprep.subr.mxu0 0.0
    %386 = vmatpush1.msra.mxu0 0.0
    %387 = vmatprep.subr.mxu0 0.0
    %388 = vmatpush1.msra.mxu0 0.0
    %389 = vmatprep.subr.mxu0 0.0
    %390 = vmatpush1.msra.mxu0 0.0
    %391 = vmatprep.subr.mxu0 0.0
    %392 = vmatpush1.msra.mxu0 0.0
    %393 = vmatprep.subr.mxu0 0.0
    %394 = vmatpush1.msra.mxu0 0.0
    %395 = vmatprep.subr.mxu0 0.0
    %396 = vmatpush1.msra.mxu0 0.0
    %397 = vmatprep.subr.mxu0 0.0
    %398 = vmatpush1.msra.mxu0 0.0
    %399 = vmatprep.subr.mxu0 0.0
    %400 = vmatpush1.msra.mxu0 0.0
    %401 = vmatprep.mubr.f32.mxu0 0.0
    %402 = vmatmul.mubr.f32.gmra.mrb[0].mxu0 %v333
    %v403 = vpop.f32.mrb[0].mxu0
    %v404 = vadd.f32 0.0, %v403
    %v405 = vpop.f32.mrb[0].mxu0
    %406 = vmatprep.mubr.f32.mxu0 0.0
    %407 = vmatmul.mubr.f32.gmra.mrb[0].mxu0 %v334
    %v408 = vpop.f32.mrb[0].mxu0
    %v409 = vadd.f32 0.0, %v408
    %v410 = vpop.f32.mrb[0].mxu0
    %411 = vdwg.mxu0
    %v412 = vadd.f32 %v335, %v404
    %v413 = vadd.f32 %v336, %v409
    %414 = vst [vmem:[#allocation2] sm:$0xff] %v412
    %415 = vst [vmem:[#allocation2 + $0x8] sm:$0xff] %v413
    // Predicated region
    $region22: #{tpu_custom_call.1} parent=1 // pred_check
      %p416 = pneg %p18
    $region23: #{tpu_custom_call.1} parent=1 // pred_check_branch
      %418 = sbr.rel (%p416) target = $region25
    $region24: #{tpu_custom_call.1} parent=1 // pred_region
      %v419 = vld [vmem:[#allocation2] sm:$0xff]
      %v420 = vld [vmem:[#allocation2 + $0x8] sm:$0xff]
      %v421 = vld [vmem:[%s2] sm:$0xff]
      %v422 = vld [vmem:[%s2 + $0x8] sm:$0xff]
      %424 = vset.pattern.permute.xlu0 0
      %425 = vperm.xlu0 %424, %v421
      %v426 = vpop.permute.xlu0 %425
      %429 = vset.pattern.permute.xlu0 0
      %430 = vperm.xlu0 %429, %v422
      %v431 = vpop.permute.xlu0 %430
      %v433 = vmul.f32 %v419, %v426
      %v434 = vmul.f32 %v420, %v431
      %435 = vst [vmem:[#allocation3] sm:$0xff] %v433
      %436 = vst [vmem:[#allocation3 + $0x8] sm:$0xff] %v434
    $region25: #{tpu_custom_call.1} parent=1 // pred_fallthru
      _
    // Predicated region
    $region26: #{tpu_custom_call.1} parent=1 // pred_check
      _
    $region27: #{tpu_custom_call.1} parent=1 // pred_check_branch
      %438 = sbr.rel (0) target = $region29
    $region28: #{tpu_custom_call.1} parent=1 // pred_region
      %s440 = ssub.s32 256, 256
      %441 = vsyncadd [#allocation4], %s440
      %s442 = sshll.u32 [#allocation3], 4
      %s443 = int_to_ptr.vmem [resolvable:$true] %s442
      %448 = dma.vmem_to_hbm [thread:$0]  %s443, 256, %s4, [#allocation4], 128, 128, 8
    $region29: #{tpu_custom_call.1} parent=1 // pred_fallthru
      _
    // Predicated region
    $region30: #{tpu_custom_call.1} parent=1 // pred_check
      _
    $region31: #{tpu_custom_call.1} parent=1 // pred_check_branch
      %450 = sbr.rel (0) target = $region33
    $region32: #{tpu_custom_call.1} parent=1 // pred_region
      %451 = dma.done [#allocation4], 256
    $region33: #{tpu_custom_call.1} parent=1 // pred_fallthru
      _
    %452 = vsyncpa [#allocation4], 1

</llo_original>
